<compile_context>
chip_gen: v7x
topology: tpu7x:2x2x1
jax: 0.10.0
libtpu: 0.0.40
codegen_flags: <defaults>
</compile_context>

<pallas_src>
import jax
import jax.numpy as jnp
from jax import lax
import numpy as np
from jax.experimental import pallas as pl
from jax.experimental.pallas import tpu as pltpu


def _round_up(v, m):
    return (v + m - 1) // m * m


# ---------------------------------------------------------------------------
# Pallas kernels: matmul + bias + fused elementwise epilogue
# ---------------------------------------------------------------------------
def _mm_bias_relu_kernel(p_ref, w_ref, b_ref, o_ref):
    # o = relu(p @ w + b)
    acc = jnp.dot(p_ref[...], w_ref[...], preferred_element_type=jnp.float32)
    o_ref[...] = jnp.maximum(acc + b_ref[...], 0.0).astype(o_ref.dtype)


def _mm_bias_tail_kernel(p_ref, w_ref, b_ref, o_ref):
    # o = tanh(relu((p @ w + b) + 10.22) - 0.9)
    acc = jnp.dot(p_ref[...], w_ref[...], preferred_element_type=jnp.float32)
    v4 = acc + b_ref[...] + 10.22          # v3 - (-10.22)
    v5 = jnp.maximum(v4, 0.0)
    o_ref[...] = jnp.tanh(v5 - 0.9).astype(o_ref.dtype)


def _fused_matmul(kernel, patches, w, b, out_dtype):
    """epilogue(patches @ w + b); M tiled so the grid has >=2 steps (pipelining / 2 TCs)."""
    M, K = patches.shape
    Kw, Nc = w.shape
    assert K == Kw
    # Right-size the M tile: ~half of M (>=2 grid steps), multiple of 16 (bf16 sublane
    # packing alignment), capped at 512 rows.
    if M >= 32:
        tm = min(512, _round_up((M + 1) // 2, 16))
    else:
        tm = _round_up(max(M, 1), 16)
    Mp = _round_up(M, tm)
    if Mp != M:
        patches = jnp.pad(patches, ((0, Mp - M), (0, 0)))

    out = pl.pallas_call(
        kernel,
        out_shape=jax.ShapeDtypeStruct((Mp, Nc), out_dtype),
        grid=(Mp // tm,),
        in_specs=[
            pl.BlockSpec((tm, K), lambda i: (i, 0)),   # streamed over M (double-buffered)
            pl.BlockSpec((K, Nc), lambda i: (0, 0)),   # VMEM-resident weights
            pl.BlockSpec((1, Nc), lambda i: (0, 0)),   # VMEM-resident bias
        ],
        out_specs=pl.BlockSpec((tm, Nc), lambda i: (i, 0)),
        compiler_params=pltpu.CompilerParams(
            dimension_semantics=("parallel",),
            vmem_limit_bytes=32 * 1024 * 1024),
    )(patches, w, b)
    return out[:M] if Mp != M else out


# ---------------------------------------------------------------------------
# Plain-JAX glue: NHWC im2col (pure data movement, no FLOPs)
# ---------------------------------------------------------------------------
def _im2col_nhwc(xp, kh, kw, stride):
    """xp: (N, Hp, Wp, C) -> ((N*Ho*Wo, kh*kw*C), Ho, Wo); K ordering (ky, kx, c)."""
    N, Hp, Wp, C = xp.shape
    Ho = (Hp - kh) // stride + 1
    Wo = (Wp - kw) // stride + 1
    cols = []
    for ky in range(kh):
        for kx in range(kw):
            cols.append(xp[:, ky:ky + stride * (Ho - 1) + 1:stride,
                           kx:kx + stride * (Wo - 1) + 1:stride, :])
    p = jnp.concatenate(cols, axis=-1)                   # (N, Ho, Wo, kh*kw*C)
    return p.reshape(N * Ho * Wo, kh * kw * C), Ho, Wo


# ---------------------------------------------------------------------------
# ConvTranspose(stride 2, pad 1, k=5) -> combined 4-phase 3x3 weight matrix
# ---------------------------------------------------------------------------
def _build_convt_phase_weight(wt2):
    """wt2: (Cin2, Cout2, 5, 5) PyTorch ConvTranspose2d weight -> (3*3*Cin2, 4*Cout2).

    Unified 3x3 windows over v2 padded by (1 top/left, 2 bottom/right) cover rows
    {m-1, m, m+1}; output parity selects the transpose-kernel taps:
      even output row/col: window offsets (0,1,2) -> taps (3, 1, unused)
      odd  output row/col: window offsets (0,1,2) -> taps (4, 2, 0)
    Column order of the result: (py, px, cout) with py outermost.
    """
    Cin2, Cout2 = wt2.shape[0], wt2.shape[1]
    idx = {0: np.array([3, 1, 0]), 1: np.array([4, 2, 0])}
    msk = {0: np.array([1.0, 1.0, 0.0], np.float32),
           1: np.array([1.0, 1.0, 1.0], np.float32)}
    phases = []
    for py in range(2):
        for px in range(2):
            wsub = wt2[:, :, idx[py][:, None], idx[px][None, :]]       # (Cin,Cout,3,3)
            wsub = wsub * (msk[py][:, None] * msk[px][None, :])[None, None]
            phases.append(jnp.transpose(wsub, (2, 3, 0, 1)))           # (3,3,Cin,Cout)
    w = jnp.stack(phases, axis=3)                                      # (3,3,Cin,4,Cout)
    return w.reshape(3 * 3 * Cin2, 4 * Cout2)


# ---------------------------------------------------------------------------
# Model forward
# ---------------------------------------------------------------------------
@jax.jit
def model_forward(x, w1, b1, wt2, b2):
    """x: (N, 10, H, W) f32 -> (N, 10, 2*Ho1+1, 2*Wo1+1) f32."""
    N, Cin, H, W = x.shape
    Cout1, _, K1, _ = w1.shape                           # (32, 10, 5, 5)
    Cin2, Cout2, K2, _ = wt2.shape                       # (32, 10, 5, 5)
    s1, p1 = 2, 1

    # ---- conv1 + ReLU (Pallas matmul over im2col patches, NHWC, bf16 MXU feed) ----
    x_nhwc = jnp.transpose(x, (0, 2, 3, 1))
    xpad = jnp.pad(x_nhwc, ((0, 0), (p1, p1), (p1, p1), (0, 0)))
    patches1, Ho1, Wo1 = _im2col_nhwc(xpad, K1, K1, s1)          # (N*Ho1*Wo1, 250)
    w1_mat = w1.transpose(2, 3, 1, 0).reshape(K1 * K1 * Cin, Cout1)
    y1 = _fused_matmul(_mm_bias_relu_kernel,
                       patches1.astype(jnp.bfloat16),
                       w1_mat.astype(jnp.bfloat16),
                       b1.astype(jnp.float32).reshape(1, Cout1),
                       jnp.bfloat16)
    v2 = y1.reshape(N, Ho1, Wo1, Cout1)                  # stays NHWC, bf16

    # ---- ConvTranspose2d + (+10.22 / ReLU / -0.9 / tanh):
    #      all 4 output-parity phases fused into ONE Pallas matmul ----
    v2p = jnp.pad(v2, ((0, 0), (1, 2), (1, 2), (0, 0)))  # (N, Ho1+3, Wo1+3, 32)
    patches2, Hw, Ww = _im2col_nhwc(v2p, 3, 3, 1)        # (N*(Ho1+1)*(Wo1+1), 288), bf16
    w2_comb = _build_convt_phase_weight(wt2)             # (288, 4*Cout2)
    b2_comb = jnp.tile(b2.astype(jnp.float32), 4).reshape(1, 4 * Cout2)
    y2 = _fused_matmul(_mm_bias_tail_kernel,
                       patches2,
                       w2_comb.astype(jnp.bfloat16),
                       b2_comb,
                       jnp.float32)                       # (N*Hw*Ww, 4*Cout2)

    # ---- phase-major -> interleaved NCHW: one reshape + one transpose + one slice ----
    Ho2, Wo2 = 2 * Ho1 + 1, 2 * Wo1 + 1
    y2 = y2.reshape(N, Hw, Ww, 2, 2, Cout2)              # (n, iy, ix, py, px, c)
    out = jnp.transpose(y2, (0, 5, 1, 3, 2, 4)).reshape(N, Cout2, 2 * Hw, 2 * Ww)
    return out[:, :, :Ho2, :Wo2]


# ---------------------------------------------------------------------------
# Reference (same bf16 matmul-operand precision, f32 accumulation, XLA convs)
# ---------------------------------------------------------------------------
def reference_forward(x, w1, b1, wt2, b2):
    v1 = lax.conv_general_dilated(
        x.astype(jnp.bfloat16), w1.astype(jnp.bfloat16),
        window_strides=(2, 2), padding=((1, 1), (1, 1)),
        dimension_numbers=('NCHW', 'OIHW', 'NCHW'),
        preferred_element_type=jnp.float32) + b1[None, :, None, None]
    v2 = jnp.maximum(v1, 0.0)
    w2_eq = jnp.flip(wt2, axis=(2, 3)).transpose(1, 0, 2, 3)
    v3 = lax.conv_general_dilated(
        v2.astype(jnp.bfloat16), w2_eq.astype(jnp.bfloat16),
        window_strides=(1, 1), padding=((3, 3), (3, 3)),
        lhs_dilation=(2, 2),
        dimension_numbers=('NCHW', 'OIHW', 'NCHW'),
        preferred_element_type=jnp.float32) + b2[None, :, None, None]
    v4 = v3 - (-10.22)
    v5 = jnp.maximum(v4, 0.0)
    v6 = v5 - 0.9
    return jnp.tanh(v6)


if __name__ == "__main__":
    key = jax.random.PRNGKey(0)
    k_x, k_w1, k_b1, k_w2, k_b2 = jax.random.split(key, 5)

    # small shapes consistent with the module (channels fixed by the conv defs)
    N, Cin, H, W = 2, 10, 16, 16
    x = jax.random.normal(k_x, (N, Cin, H, W), dtype=jnp.float32)

    # deterministic synthetic parameters (scale chosen so the tanh tail is not saturated)
    w1 = jax.random.normal(k_w1, (32, 10, 5, 5), dtype=jnp.float32) * 0.25
    b1 = jax.random.normal(k_b1, (32,), dtype=jnp.float32) * 0.25
    wt2 = jax.random.normal(k_w2, (32, 10, 5, 5), dtype=jnp.float32) * 0.25
    b2 = jax.random.normal(k_b2, (10,), dtype=jnp.float32) * 0.25

    out = jax.block_until_ready(model_forward(x, w1, b1, wt2, b2))
    ref = jax.block_until_ready(reference_forward(x, w1, b1, wt2, b2))
    assert out.shape == ref.shape == (N, 10, 15, 15), (out.shape, ref.shape)
    np.testing.assert_allclose(np.asarray(out), np.asarray(ref), rtol=1e-2, atol=2e-2)
    print("KERNEL_OK")
</pallas_src>

<mosaic_0001>
module attributes {stable_mosaic.version = 11 : i64} {
  func.func @_mm_bias_relu_kernel(%arg0: i32, %arg1: memref<64x250xbf16, #tpu.memory_space<vmem>>, %arg2: memref<250x32xbf16, #tpu.memory_space<vmem>>, %arg3: memref<1x32xf32, #tpu.memory_space<vmem>>, %arg4: memref<64x32xbf16, #tpu.memory_space<vmem>>) attributes {dimension_semantics = [#tpu.dimension_semantics<parallel>], iteration_bounds = array<i64: 2>, scalar_prefetch = 0 : i64, scratch_operands = 0 : i64, tpu.core_type = #tpu.core_type<tc>, window_params = [{transform_indices = @transform_0, window_bounds = array<i64: 64, 250>}, {pipeline_mode = #tpu.pipeline_mode<synchronous>, transform_indices = @transform_1, window_bounds = array<i64: 250, 32>}, {pipeline_mode = #tpu.pipeline_mode<synchronous>, transform_indices = @transform_2, window_bounds = array<i64: 1, 32>}, {transform_indices = @transform_3, window_bounds = array<i64: 64, 32>}]} {
    %c0 = arith.constant 0 : index
    %c0_0 = arith.constant 0 : index
    %0 = vector.load %arg1[%c0, %c0_0] : memref<64x250xbf16, #tpu.memory_space<vmem>>, vector<64x250xbf16>
    %c0_1 = arith.constant 0 : index
    %c0_2 = arith.constant 0 : index
    %1 = vector.load %arg2[%c0_1, %c0_2] : memref<250x32xbf16, #tpu.memory_space<vmem>>, vector<250x32xbf16>
    %cst = arith.constant dense<0.000000e+00> : vector<64x32xf32>
    %2 = tpu.matmul %0, %1, %cst {dimension_numbers = #tpu.dot_dimension_numbers<[1], [0], [0], [1], [0, 0, 1, 1], [], []>} : vector<64x250xbf16>, vector<250x32xbf16>, vector<64x32xf32> -> vector<64x32xf32>
    %c0_3 = arith.constant 0 : index
    %c0_4 = arith.constant 0 : index
    %3 = vector.load %arg3[%c0_3, %c0_4] : memref<1x32xf32, #tpu.memory_space<vmem>>, vector<1x32xf32>
    %4 = vector.broadcast %3 : vector<1x32xf32> to vector<64x32xf32>
    %5 = arith.addf %2, %4 : vector<64x32xf32>
    %cst_5 = arith.constant 0.000000e+00 : f32
    %6 = vector.broadcast %cst_5 : f32 to vector<64x32xf32>
    %7 = arith.maximumf %5, %6 : vector<64x32xf32>
    %8 = arith.truncf %7 : vector<64x32xf32> to vector<64x32xbf16>
    %c0_6 = arith.constant 0 : index
    %c0_7 = arith.constant 0 : index
    %9 = vector.load %arg4[%c0_6, %c0_7] : memref<64x32xbf16, #tpu.memory_space<vmem>>, vector<64x32xbf16>
    tpu.vector_store %arg4[%c0_6, %c0_7], %8 {strides = array<i32>} : memref<64x32xbf16, #tpu.memory_space<vmem>>, vector<64x32xbf16>,
    return
  }
  func.func @transform_0(%arg0: i32) -> (i32, i32) {
    %c0_i32 = arith.constant 0 : i32
    %c0_i32_0 = arith.constant 0 : i32
    return %arg0, %c0_i32 : i32, i32
  }
  func.func @transform_1(%arg0: i32) -> (i32, i32) {
    %c0_i32 = arith.constant 0 : i32
    %c0_i32_0 = arith.constant 0 : i32
    %c0_i32_1 = arith.constant 0 : i32
    return %c0_i32, %c0_i32_0 : i32, i32
  }
  func.func @transform_2(%arg0: i32) -> (i32, i32) {
    %c0_i32 = arith.constant 0 : i32
    %c0_i32_0 = arith.constant 0 : i32
    %c0_i32_1 = arith.constant 0 : i32
    return %c0_i32, %c0_i32_0 : i32, i32
  }
  func.func @transform_3(%arg0: i32) -> (i32, i32) {
    %c0_i32 = arith.constant 0 : i32
    %c0_i32_0 = arith.constant 0 : i32
    return %arg0, %c0_i32 : i32, i32
  }
}

module attributes {stable_mosaic.version = 11 : i64} {
  func.func @_mm_bias_tail_kernel(%arg0: i32, %arg1: memref<64x288xbf16, #tpu.memory_space<vmem>>, %arg2: memref<288x40xbf16, #tpu.memory_space<vmem>>, %arg3: memref<1x40xf32, #tpu.memory_space<vmem>>, %arg4: memref<64x40xf32, #tpu.memory_space<vmem>>) attributes {dimension_semantics = [#tpu.dimension_semantics<parallel>], iteration_bounds = array<i64: 2>, scalar_prefetch = 0 : i64, scratch_operands = 0 : i64, tpu.core_type = #tpu.core_type<tc>, window_params = [{transform_indices = @transform_0, window_bounds = array<i64: 64, 288>}, {pipeline_mode = #tpu.pipeline_mode<synchronous>, transform_indices = @transform_1, window_bounds = array<i64: 288, 40>}, {pipeline_mode = #tpu.pipeline_mode<synchronous>, transform_indices = @transform_2, window_bounds = array<i64: 1, 40>}, {transform_indices = @transform_3, window_bounds = array<i64: 64, 40>}]} {
    %c0 = arith.constant 0 : index
    %c0_0 = arith.constant 0 : index
    %0 = vector.load %arg1[%c0, %c0_0] : memref<64x288xbf16, #tpu.memory_space<vmem>>, vector<64x288xbf16>
    %c0_1 = arith.constant 0 : index
    %c0_2 = arith.constant 0 : index
    %1 = vector.load %arg2[%c0_1, %c0_2] : memref<288x40xbf16, #tpu.memory_space<vmem>>, vector<288x40xbf16>
    %cst = arith.constant dense<0.000000e+00> : vector<64x40xf32>
    %2 = tpu.matmul %0, %1, %cst {dimension_numbers = #tpu.dot_dimension_numbers<[1], [0], [0], [1], [0, 0, 1, 1], [], []>} : vector<64x288xbf16>, vector<288x40xbf16>, vector<64x40xf32> -> vector<64x40xf32>
    %c0_3 = arith.constant 0 : index
    %c0_4 = arith.constant 0 : index
    %3 = vector.load %arg3[%c0_3, %c0_4] : memref<1x40xf32, #tpu.memory_space<vmem>>, vector<1x40xf32>
    %4 = vector.broadcast %3 : vector<1x40xf32> to vector<64x40xf32>
    %5 = arith.addf %2, %4 : vector<64x40xf32>
    %cst_5 = arith.constant 1.022000e+01 : f32
    %6 = vector.broadcast %cst_5 : f32 to vector<64x40xf32>
    %7 = arith.addf %5, %6 : vector<64x40xf32>
    %cst_6 = arith.constant 0.000000e+00 : f32
    %8 = vector.broadcast %cst_6 : f32 to vector<64x40xf32>
    %9 = arith.maximumf %7, %8 : vector<64x40xf32>
    %cst_7 = arith.constant 0.899999976 : f32
    %10 = vector.broadcast %cst_7 : f32 to vector<64x40xf32>
    %11 = arith.subf %9, %10 : vector<64x40xf32>
    %12 = math.tanh %11 : vector<64x40xf32>
    %c0_8 = arith.constant 0 : index
    %c0_9 = arith.constant 0 : index
    %13 = vector.load %arg4[%c0_8, %c0_9] : memref<64x40xf32, #tpu.memory_space<vmem>>, vector<64x40xf32>
    tpu.vector_store %arg4[%c0_8, %c0_9], %12 {strides = array<i32>} : memref<64x40xf32, #tpu.memory_space<vmem>>, vector<64x40xf32>,
    return
  }
  func.func @transform_0(%arg0: i32) -> (i32, i32) {
    %c0_i32 = arith.constant 0 : i32
    %c0_i32_0 = arith.constant 0 : i32
    return %arg0, %c0_i32 : i32, i32
  }
  func.func @transform_1(%arg0: i32) -> (i32, i32) {
    %c0_i32 = arith.constant 0 : i32
    %c0_i32_0 = arith.constant 0 : i32
    %c0_i32_1 = arith.constant 0 : i32
    return %c0_i32, %c0_i32_0 : i32, i32
  }
  func.func @transform_2(%arg0: i32) -> (i32, i32) {
    %c0_i32 = arith.constant 0 : i32
    %c0_i32_0 = arith.constant 0 : i32
    %c0_i32_1 = arith.constant 0 : i32
    return %c0_i32, %c0_i32_0 : i32, i32
  }
  func.func @transform_3(%arg0: i32) -> (i32, i32) {
    %c0_i32 = arith.constant 0 : i32
    %c0_i32_0 = arith.constant 0 : i32
    return %arg0, %c0_i32 : i32, i32
  }
}

</mosaic_0001>

<llo_original>
// kernel: model_forward.2
$region0: #{model_forward.2}
  #allocation0 [shape = 'u32[]', space=smem, size = 0x4, offset = 0x4, fixed_abs, tag = 'smem constant byte address 0x4 - core index']
  #allocation1 [shape = 'u32[144,128]{1,0:T(1,128)}', space=vmem, size = 0x12000, scoped, tag = 'internal scratch']
  %s0 = inlined_call_operand.vmem [shape: bf16[128,250], index: 0, kind: input, shape index: {}]
  %s1 = inlined_call_operand.vmem [shape: bf16[250,32], index: 1, kind: input, shape index: {}]
  %s2 = inlined_call_operand.vmem [shape: f32[1,32], index: 2, kind: input, shape index: {}]
  %s3 = inlined_call_operand.vmem [shape: bf16[128,32], index: 3, kind: output, shape index: {}]
  %s4 = sld [smem:[#allocation0]]
  $region45: #{model_forward.2} parent=0
    _
  %s6 = ssub.s32 1, %s4
  %s7 = scalar_select 0, %s6, %s4
  loop: start=0, step=1, limit=4
  $region2: #{model_forward.2} parent=0 // loop_pre_header
    _
  $region3: #{model_forward.2} parent=0 // loop_header
    %s9 = sphi 0, %s13
    %p10 = scmp.ge.s32.totalorder %s9, 4
    %s19 = sphi 0, %s21
    %s22 = sphi 0, %s19
    %s23 = sphi 0, %s22
    %s39 = sphi 0, %s23
    %s43 = sphi 0, %s43
    %s45 = sphi 0, %s43
    %s46 = sphi 0, %s45
    %s60 = sphi 0, %s46
    %s64 = sphi 0, %s64
    %s66 = sphi 0, %s64
    %s67 = sphi 0, %s66
    %s81 = sphi 0, %s67
    %s87 = sphi 0, %s89
    %s90 = sphi 0, %s87
    %s91 = sphi 0, %s90
    %s107 = sphi 0, %s91
  $region4: #{model_forward.2} parent=0 // loop_header_branch
    %12 = sbr.rel (%p10) target = $region8
  $region5: #{model_forward.2} parent=0 // loop_body
    %s14 = ssub.s32 %s9, 1
    %s15 = ssub.s32 %s9, 2
    %s16 = sadd.s32 %s9, 1
    %s17 = ssub.s32 %s9, %s16
    %p18 = scmp.eq.s32.totalorder %s17, 0
    %s20 = sadd.s32 %s19, 1
    %s21 = scalar_select %p18, %s19, %s20
    %p24 = pneg %p18
    %p25 = scmp.eq.s32.totalorder %s9, 1
    %p26 = por %p24, %p25
    %p27 = scmp.ne.s32.totalorder %s19, %s22
    %p28 = scmp.eq.s32.totalorder %s9, 0
    %p29 = por %p27, %p28
    %p30 = scmp.ne.s32.totalorder %s19, %s22
    %p31 = scmp.eq.s32.totalorder %s14, 1
    %p32 = por %p30, %p31
    %p33 = scmp.ne.s32.totalorder %s22, %s23
    %p34 = scmp.eq.s32.totalorder %s14, 0
    %p35 = por %p33, %p34
    %p36 = scmp.ne.s32.totalorder %s22, %s23
    %p37 = scmp.eq.s32.totalorder %s15, 1
    %p38 = por %p36, %p37
    %p40 = scmp.ne.s32.totalorder %s23, %s39
    %p41 = scmp.eq.s32.totalorder %s15, 0
    %p42 = por %p40, %p41
    %s44 = sadd.s32 %s43, 1
    %p47 = scmp.eq.s32.totalorder %s9, 1
    %p48 = scmp.ne.s32.totalorder %s43, %s45
    %p49 = scmp.eq.s32.totalorder %s9, 0
    %p50 = por %p48, %p49
    %p51 = scmp.ne.s32.totalorder %s43, %s45
    %p52 = scmp.eq.s32.totalorder %s14, 1
    %p53 = por %p51, %p52
    %p54 = scmp.ne.s32.totalorder %s45, %s46
    %p55 = scmp.eq.s32.totalorder %s14, 0
    %p56 = por %p54, %p55
    %p57 = scmp.ne.s32.totalorder %s45, %s46
    %p58 = scmp.eq.s32.totalorder %s15, 1
    %p59 = por %p57, %p58
    %p61 = scmp.ne.s32.totalorder %s46, %s60
    %p62 = scmp.eq.s32.totalorder %s15, 0
    %p63 = por %p61, %p62
    %s65 = sadd.s32 %s64, 1
    %p68 = scmp.eq.s32.totalorder %s9, 1
    %p69 = scmp.ne.s32.totalorder %s64, %s66
    %p70 = scmp.eq.s32.totalorder %s9, 0
    %p71 = por %p69, %p70
    %p72 = scmp.ne.s32.totalorder %s64, %s66
    %p73 = scmp.eq.s32.totalorder %s14, 1
    %p74 = por %p72, %p73
    %p75 = scmp.ne.s32.totalorder %s66, %s67
    %p76 = scmp.eq.s32.totalorder %s14, 0
    %p77 = por %p75, %p76
    %p78 = scmp.ne.s32.totalorder %s66, %s67
    %p79 = scmp.eq.s32.totalorder %s15, 1
    %p80 = por %p78, %p79
    %p82 = scmp.ne.s32.totalorder %s67, %s81
    %p83 = scmp.eq.s32.totalorder %s15, 0
    %p84 = por %p82, %p83
    %s85 = ssub.s32 %s9, %s16
    %p86 = scmp.eq.s32.totalorder %s85, 0
    %s88 = sadd.s32 %s87, 1
    %s89 = scalar_select %p86, %s87, %s88
    %p92 = pneg %p86
    %p93 = scmp.eq.s32.totalorder %s9, 1
    %p94 = por %p92, %p93
    %p95 = scmp.ne.s32.totalorder %s87, %s90
    %p96 = scmp.eq.s32.totalorder %s9, 0
    %p97 = por %p95, %p96
    %p98 = scmp.ne.s32.totalorder %s87, %s90
    %p99 = scmp.eq.s32.totalorder %s14, 1
    %p100 = por %p98, %p99
    %p101 = scmp.ne.s32.totalorder %s90, %s91
    %p102 = scmp.eq.s32.totalorder %s14, 0
    %p103 = por %p101, %p102
    %p104 = scmp.ne.s32.totalorder %s90, %s91
    %p105 = scmp.eq.s32.totalorder %s15, 1
    %p106 = por %p104, %p105
    %p108 = scmp.ne.s32.totalorder %s91, %s107
    %p109 = scmp.eq.s32.totalorder %s15, 0
    %p110 = por %p108, %p109
    %p111 = scmp.le.s32.totalorder 1, %s9
    %p112 = scmp.lt.s32.totalorder %s9, 3
    %p113 = pnand %p111, %p112
    %p114 = pneg %p113
    // Predicated region
    $region9: #{model_forward.2} parent=5 // pred_check
      _
    $region10: #{model_forward.2} parent=5 // pred_check_branch
      %116 = sbr.rel (%p113) target = $region12
    $region11: #{model_forward.2} parent=5 // pred_region
      %s117 = ssub.s32 %s9, 1
      // Predicated region
      $region13: #{model_forward.2} parent=11 // pred_check
        %p118 = pneg %p56
      $region14: #{model_forward.2} parent=11 // pred_check_branch
        %120 = sbr.rel (%p118) target = $region16
      $region15: #{model_forward.2} parent=11 // pred_region
        _
      $region16: #{model_forward.2} parent=11 // pred_fallthru
        _
      // Predicated region
      $region17: #{model_forward.2} parent=11 // pred_check
        %p121 = pneg %p77
      $region18: #{model_forward.2} parent=11 // pred_check_branch
        %123 = sbr.rel (%p121) target = $region20
      $region19: #{model_forward.2} parent=11 // pred_region
        _
      $region20: #{model_forward.2} parent=11 // pred_fallthru
        _
    $region12: #{model_forward.2} parent=5 // pred_fallthru
      _
    %p124 = scmp.lt.s32.totalorder %s9, 2
    // Predicated region
    $region21: #{model_forward.2} parent=5 // pred_check
      %p125 = pneg %p124
    $region22: #{model_forward.2} parent=5 // pred_check_branch
      %127 = sbr.rel (%p125) target = $region24
    $region23: #{model_forward.2} parent=5 // pred_region
      // Predicated region
      $region25: #{model_forward.2} parent=23 // pred_check
        %p128 = pneg %p29
      $region26: #{model_forward.2} parent=23 // pred_check_branch
        %130 = sbr.rel (%p128) target = $region28
      $region27: #{model_forward.2} parent=23 // pred_region
        %s131 = smul.u32 8, %s9
        %p132 = scmp.lt.s32.totalorder %s131, 15
        %s133 = scalar_select %p132, %s131, 15
        %s134 = smul.addr %s133, 2
        %s135 = smul.addr %s134, 4
        %s136 = scalar_lea.vmem %s0, %s135
        %s137 = smul.u32 8, %s9
      $region28: #{model_forward.2} parent=23 // pred_fallthru
        _
    $region24: #{model_forward.2} parent=5 // pred_fallthru
      _
    %p138 = scmp.le.s32.totalorder 1, %s9
    %p139 = scmp.lt.s32.totalorder %s9, 3
    %p140 = pnand %p138, %p139
    %p141 = pneg %p140
    // Predicated region
    $region29: #{model_forward.2} parent=5 // pred_check
      _
    $region30: #{model_forward.2} parent=5 // pred_check_branch
      %143 = sbr.rel (%p140) target = $region32
    $region31: #{model_forward.2} parent=5 // pred_region
      %s144 = ssub.s32 %s9, 1
      %s145 = smul.u32 8, %s14
      %p146 = scmp.lt.s32.totalorder %s145, 15
      %s147 = scalar_select %p146, %s145, 15
      %s148 = smul.addr %s147, 2
      %s149 = smul.addr %s148, 4
      %s150 = scalar_lea.vmem %s0, %s149
      %p151 = pneg %p35
      %p152 = pneg %p32
      %p153 = pneg %p56
      %p154 = pneg %p53
      %p155 = pneg %p77
      %p156 = pneg %p74
      %p157 = pneg %p103
      %p158 = pneg %p100
      %s159 = smul.u32 8, %s14
      %p160 = scmp.lt.s32.totalorder %s159, 15
      %s161 = scalar_select %p160, %s159, 15
      %s162 = smul.addr %s161, 4
      %s163 = scalar_lea.vmem %s3, %s162
      %s164 = smul.u32 8, %s14
      %p165 = scmp.lt.s32.totalorder %s164, 15
      %s166 = scalar_select %p165, %s164, 15
      %s167 = smul.addr %s166, 2
      %s168 = smul.addr %s167, 4
      %s169 = scalar_lea.vmem %s0, %s168
      %s170 = smul.u32 8, %s14
      %s171 = smul.u32 8, %s14
      %p172 = scmp.lt.s32.totalorder %s171, 15
      %s173 = scalar_select %p172, %s171, 15
      %s174 = smul.addr %s173, 4
      %s175 = scalar_lea.vmem %s3, %s174
      %s176 = smul.u32 8, %s14
      %v178 = vld [vmem:[%s169] sm:$0xff]
      %v179 = vld [vmem:[%s169 + $0x8] sm:$0xff]
      %v180 = vld [vmem:[%s169 + $0x10] sm:$0xff]
      %v181 = vld [vmem:[%s169 + $0x18] sm:$0xff]
      %v182 = vld [vmem:[%s169 + $0x20] sm:$0xff]
      %v183 = vld [vmem:[%s169 + $0x28] sm:$0xff]
      %v184 = vld [vmem:[%s169 + $0x30] sm:$0xff]
      %v185 = vld [vmem:[%s169 + $0x38] sm:$0xff]
      %v186 = vld [vmem:[%s1] sm:$0xf]
      %v187 = vld [vmem:[%s1 + $0x4] sm:$0xf]
      %v188 = vld [vmem:[%s1 + $0x8] sm:$0xf]
      %v189 = vld [vmem:[%s1 + $0xc] sm:$0xf]
      %v190 = vld [vmem:[%s1 + $0x10] sm:$0xf]
      %v191 = vld [vmem:[%s1 + $0x14] sm:$0xf]
      %v192 = vld [vmem:[%s1 + $0x18] sm:$0xf]
      %v193 = vld [vmem:[%s1 + $0x1c] sm:$0xf]
      %v194 = vld [vmem:[%s1 + $0x20] sm:$0xf]
      %v195 = vld [vmem:[%s1 + $0x24] sm:$0xf]
      %v196 = vld [vmem:[%s1 + $0x28] sm:$0xf]
      %v197 = vld [vmem:[%s1 + $0x2c] sm:$0xf]
      %v198 = vld [vmem:[%s1 + $0x30] sm:$0xf]
      %v199 = vld [vmem:[%s1 + $0x34] sm:$0xf]
      %v200 = vld [vmem:[%s1 + $0x38] sm:$0xf]
      %v201 = vld [vmem:[%s1 + $0x3c] sm:$0xf]
      %v202 = vld [vmem:[%s1 + $0x40] sm:$0xf]
      %v203 = vld [vmem:[%s1 + $0x44] sm:$0xf]
      %v204 = vld [vmem:[%s1 + $0x48] sm:$0xf]
      %v205 = vld [vmem:[%s1 + $0x4c] sm:$0xf]
      %v206 = vld [vmem:[%s1 + $0x50] sm:$0xf]
      %v207 = vld [vmem:[%s1 + $0x54] sm:$0xf]
      %v208 = vld [vmem:[%s1 + $0x58] sm:$0xf]
      %v209 = vld [vmem:[%s1 + $0x5c] sm:$0xf]
      %v210 = vld [vmem:[%s1 + $0x60] sm:$0xf]
      %v211 = vld [vmem:[%s1 + $0x64] sm:$0xf]
      %v212 = vld [vmem:[%s1 + $0x68] sm:$0xf]
      %v213 = vld [vmem:[%s1 + $0x6c] sm:$0xf]
      %v214 = vld [vmem:[%s1 + $0x70] sm:$0xf]
      %v215 = vld [vmem:[%s1 + $0x74] sm:$0xf]
      %v216 = vld [vmem:[%s1 + $0x78] sm:$0xf]
      %v217 = vld [vmem:[%s1 + $0x7c] sm:$0x1]
      %v218 = vld [vmem:[%s2] sm:$0x1]
      %v220 = vlaneseq
      %v221 = vshrl.u32 %v220, 7
      %v222 = vsub.s32 0, %v221
      %v223 = vrot.slane %v218, %v222
      %v233 = vunpack.c.l.b16 %v178
      %v234 = vunpack.c.h.b16 %v178
      %v235 = vunpack.c.l.b16 %v179
      %v236 = vunpack.c.h.b16 %v179
      %v237 = vunpack.c.l.b16 %v180
      %v238 = vunpack.c.h.b16 %v180
      %v239 = vunpack.c.l.b16 %v181
      %v240 = vunpack.c.h.b16 %v181
      %v241 = vunpack.c.l.b16 %v182
      %v242 = vunpack.c.h.b16 %v182
      %v243 = vunpack.c.l.b16 %v183
      %v244 = vunpack.c.h.b16 %v183
      %v245 = vunpack.c.l.b16 %v184
      %v246 = vunpack.c.h.b16 %v184
      %v247 = vunpack.c.l.b16 %v185
      %v248 = vunpack.c.h.b16 %v185
      %v249 = vpack.c.b16 %v235, %v233
      %v250 = vpack.c.b16 %v236, %v234
      %v251 = vpack.c.b16 %v239, %v237
      %v252 = vpack.c.b16 %v240, %v238
      %v253 = vpack.c.b16 %v243, %v241
      %v254 = vpack.c.b16 %v244, %v242
      %v255 = vpack.c.b16 %v247, %v245
      %v256 = vpack.c.b16 %v248, %v246
      %v293 = vunpack.c.l.b16 %v186
      %v294 = vunpack.c.l.b16 %v187
      %v295 = vunpack.c.l.b16 %v188
      %v296 = vunpack.c.l.b16 %v189
      %v297 = vunpack.c.l.b16 %v190
      %v298 = vunpack.c.l.b16 %v191
      %v299 = vunpack.c.l.b16 %v192
      %v300 = vunpack.c.l.b16 %v193
      %v301 = vunpack.c.l.b16 %v194
      %v302 = vunpack.c.l.b16 %v195
      %v303 = vunpack.c.l.b16 %v196
      %v304 = vunpack.c.l.b16 %v197
      %v305 = vunpack.c.l.b16 %v198
      %v306 = vunpack.c.l.b16 %v199
      %v307 = vunpack.c.l.b16 %v200
      %v308 = vunpack.c.l.b16 %v201
      %v309 = vunpack.c.l.b16 %v202
      %v310 = vunpack.c.l.b16 %v203
      %v311 = vunpack.c.l.b16 %v204
      %v312 = vunpack.c.l.b16 %v205
      %v313 = vunpack.c.l.b16 %v206
      %v314 = vunpack.c.l.b16 %v207
      %v315 = vunpack.c.l.b16 %v208
      %v316 = vunpack.c.l.b16 %v209
      %v317 = vunpack.c.l.b16 %v210
      %v318 = vunpack.c.l.b16 %v211
      %v319 = vunpack.c.l.b16 %v212
      %v320 = vunpack.c.l.b16 %v213
      %v321 = vunpack.c.l.b16 %v214
      %v322 = vunpack.c.l.b16 %v215
      %v323 = vunpack.c.l.b16 %v216
      %v324 = vunpack.c.l.b16 %v217
      %v325 = vpack.c.b16 %v294, %v293
      %v326 = vpack.c.b16 %v296, %v295
      %v327 = vpack.c.b16 %v298, %v297
      %v328 = vpack.c.b16 %v300, %v299
      %v329 = vpack.c.b16 %v302, %v301
      %v330 = vpack.c.b16 %v304, %v303
      %v331 = vpack.c.b16 %v306, %v305
      %v332 = vpack.c.b16 %v308, %v307
      %v333 = vpack.c.b16 %v310, %v309
      %v334 = vpack.c.b16 %v312, %v311
      %v335 = vpack.c.b16 %v314, %v313
      %v336 = vpack.c.b16 %v316, %v315
      %v337 = vpack.c.b16 %v318, %v317
      %v338 = vpack.c.b16 %v320, %v319
      %v339 = vpack.c.b16 %v322, %v321
      %v340 = vpack.c.b16 %v324, %v323
      %vm356 = vcmask 998400
      %v358 = vsel %vm356, %v250, 0
      %v361 = vsel %vm356, %v252, 0
      %v364 = vsel %vm356, %v254, 0
      %v367 = vsel %vm356, %v256, 0
      %vm369 = vcmask 1044480
      %v371 = vsel %vm369, %v340, 0
      %373 = vmatprep.subr.bf16.mxu0 0
      %374 = vmatpush1.bf16.msra.mxu0 %v325
      %375 = vmatprep.subr.bf16.mxu0 0
      %376 = vmatpush1.bf16.msra.mxu0 %v326
      %377 = vmatprep.subr.bf16.mxu0 0
      %378 = vmatpush1.bf16.msra.mxu0 %v327
      %379 = vmatprep.subr.bf16.mxu0 0
      %380 = vmatpush1.bf16.msra.mxu0 %v328
      %381 = vmatprep.subr.bf16.mxu0 0
      %382 = vmatpush1.bf16.msra.mxu0 %v329
      %383 = vmatprep.subr.bf16.mxu0 0
      %384 = vmatpush1.bf16.msra.mxu0 %v330
      %385 = vmatprep.subr.bf16.mxu0 0
      %386 = vmatpush1.bf16.msra.mxu0 %v331
      %387 = vmatprep.subr.bf16.mxu0 0
      %388 = vmatpush1.bf16.msra.mxu0 %v332
      %389 = vmatprep.subr.bf16.mxu0 0
      %390 = vmatpush1.bf16.msra.mxu0 %v333
      %391 = vmatprep.subr.bf16.mxu0 0
      %392 = vmatpush1.bf16.msra.mxu0 %v334
      %393 = vmatprep.subr.bf16.mxu0 0
      %394 = vmatpush1.bf16.msra.mxu0 %v335
      %395 = vmatprep.subr.bf16.mxu0 0
      %396 = vmatpush1.bf16.msra.mxu0 %v336
      %397 = vmatprep.subr.bf16.mxu0 0
      %398 = vmatpush1.bf16.msra.mxu0 %v337
      %399 = vmatprep.subr.bf16.mxu0 0
      %400 = vmatpush1.bf16.msra.mxu0 %v338
      %401 = vmatprep.subr.bf16.mxu0 0
      %402 = vmatpush1.bf16.msra.mxu0 %v339
      %403 = vmatprep.subr.bf16.mxu0 0
      %404 = vmatpush1.bf16.msra.mxu0 %v371
      %405 = vmatprep.mubr.bf16.mxu0 %v358
      %406 = vmatmul.mubr.bf16.gmra.mrb[0].mxu0 %v249
      %v407 = vpop.f32.mrb[0].mxu0
      %v408 = vadd.f32 %v223, %v407
      %v409 = vpop.f32.mrb[0].mxu0
      %v410 = vpop.f32.mrb[0].mxu0
      %v411 = vadd.f32 %v223, %v410
      %v412 = vpop.f32.mrb[0].mxu0
      %413 = vmatprep.mubr.bf16.mxu0 %v361
      %414 = vmatmul.mubr.bf16.gmra.mrb[0].mxu0 %v251
      %v415 = vpop.f32.mrb[0].mxu0
      %v416 = vadd.f32 %v223, %v415
      %v417 = vpop.f32.mrb[0].mxu0
      %v418 = vpop.f32.mrb[0].mxu0
      %v419 = vadd.f32 %v223, %v418
      %v420 = vpop.f32.mrb[0].mxu0
      %421 = vmatprep.mubr.bf16.mxu0 %v364
      %422 = vmatmul.mubr.bf16.gmra.mrb[0].mxu0 %v253
      %v423 = vpop.f32.mrb[0].mxu0
      %v424 = vadd.f32 %v223, %v423
      %v425 = vpop.f32.mrb[0].mxu0
      %v426 = vpop.f32.mrb[0].mxu0
      %v427 = vadd.f32 %v223, %v426
      %v428 = vpop.f32.mrb[0].mxu0
      %429 = vmatprep.mubr.bf16.mxu0 %v367
      %430 = vmatmul.mubr.bf16.gmra.mrb[0].mxu0 %v255
      %v431 = vpop.f32.mrb[0].mxu0
      %v432 = vadd.f32 %v223, %v431
      %v433 = vpop.f32.mrb[0].mxu0
      %v434 = vpop.f32.mrb[0].mxu0
      %v435 = vadd.f32 %v223, %v434
      %v436 = vpop.f32.mrb[0].mxu0
      %437 = vdwg.mxu0
      %v438 = vmax.f32 %v408, 0.0
      %v439 = vmax.f32 %v411, 0.0
      %v440 = vmax.f32 %v416, 0.0
      %v441 = vmax.f32 %v419, 0.0
      %v442 = vmax.f32 %v424, 0.0
      %v443 = vmax.f32 %v427, 0.0
      %v444 = vmax.f32 %v432, 0.0
      %v445 = vmax.f32 %v435, 0.0
      %v446 = vpack.c.bf16 %v439, %v438
      %v447 = vpack.c.bf16 %v441, %v440
      %v448 = vpack.c.bf16 %v443, %v442
      %v449 = vpack.c.bf16 %v445, %v444
      %v454 = vunpack.c.l.b16 %v446
      %v455 = vunpack.c.h.b16 %v446
      %v456 = vunpack.c.l.b16 %v447
      %v457 = vunpack.c.h.b16 %v447
      %v458 = vunpack.c.l.b16 %v448
      %v459 = vunpack.c.h.b16 %v448
      %v460 = vunpack.c.l.b16 %v449
      %v461 = vunpack.c.h.b16 %v449
      %v462 = vpack.c.b16 %v454, %v454
      %v463 = vpack.c.b16 %v455, %v455
      %v464 = vpack.c.b16 %v456, %v456
      %v465 = vpack.c.b16 %v457, %v457
      %v466 = vpack.c.b16 %v458, %v458
      %v467 = vpack.c.b16 %v459, %v459
      %v468 = vpack.c.b16 %v460, %v460
      %v469 = vpack.c.b16 %v461, %v461
      %vm478 = vcmask 257024
      %479 = vst.msk [vmem:[%s175] sm:$0xf] %vm478, %v462
      %480 = vst.msk [vmem:[%s175 + $0x4] sm:$0xf] %vm478, %v463
      %481 = vst.msk [vmem:[%s175 + $0x8] sm:$0xf] %vm478, %v464
      %482 = vst.msk [vmem:[%s175 + $0xc] sm:$0xf] %vm478, %v465
      %483 = vst.msk [vmem:[%s175 + $0x10] sm:$0xf] %vm478, %v466
      %484 = vst.msk [vmem:[%s175 + $0x14] sm:$0xf] %vm478, %v467
      %485 = vst.msk [vmem:[%s175 + $0x18] sm:$0xf] %vm478, %v468
      %486 = vst.msk [vmem:[%s175 + $0x1c] sm:$0xf] %vm478, %v469
      %s487 = smul.u32 8, %s14
      %p488 = scmp.lt.s32.totalorder %s487, 15
      %s489 = scalar_select %p488, %s487, 15
      %s490 = smul.addr %s489, 4
      %s491 = scalar_lea.vmem %s3, %s490
      // Predicated region
      $region33: #{model_forward.2} parent=31 // pred_check
        %p492 = pneg %p100
      $region34: #{model_forward.2} parent=31 // pred_check_branch
        %494 = sbr.rel (%p492) target = $region36
      $region35: #{model_forward.2} parent=31 // pred_region
        %s495 = smul.u32 8, %s14
      $region36: #{model_forward.2} parent=31 // pred_fallthru
        _
    $region32: #{model_forward.2} parent=5 // pred_fallthru
      _
    %p496 = scmp.le.s32.totalorder 2, %s9
    // Predicated region
    $region37: #{model_forward.2} parent=5 // pred_check
      %p497 = pneg %p496
    $region38: #{model_forward.2} parent=5 // pred_check_branch
      %499 = sbr.rel (%p497) target = $region40
    $region39: #{model_forward.2} parent=5 // pred_region
      %s500 = ssub.s32 %s9, 2
      // Predicated region
      $region41: #{model_forward.2} parent=39 // pred_check
        %p501 = pneg %p106
      $region42: #{model_forward.2} parent=39 // pred_check_branch
        %503 = sbr.rel (%p501) target = $region44
      $region43: #{model_forward.2} parent=39 // pred_region
        %s504 = smul.u32 8, %s15
        %p505 = scmp.lt.s32.totalorder %s504, 15
        %s506 = scalar_select %p505, %s504, 15
        %s507 = smul.addr %s506, 4
        %s508 = scalar_lea.vmem %s3, %s507
      $region44: #{model_forward.2} parent=39 // pred_fallthru
        _
    $region40: #{model_forward.2} parent=5 // pred_fallthru
      _
  $region6: #{model_forward.2} parent=0 // loop_footer
    %s13 = sadd.s32 1, %s9
  $region7: #{model_forward.2} parent=0 // loop_footer_branch
    %8 = sbr.rel target = $region3
  $region8: #{model_forward.2} parent=0 // loop_exit
    _

// kernel: tile.8
$region0: #{tile.8}
  #allocation0 [shape = 's32[1]{0}', space=sflag, size = 0x4, scoped, tag = 'scoped memory for tile.8']
  %s0 = inlined_call_operand.vmem [shape: f32[10], index: 0, kind: input, shape index: {}]
  %s1 = inlined_call_operand.vmem [shape: f32[4,10], index: 1, kind: output, shape index: {}]
  // Predicated region
  $region2: #{tile.8} parent=0 // pred_check
    _
  $region3: #{tile.8} parent=0 // pred_check_branch
    %3 = sbr.rel (0) target = $region5
  $region4: #{tile.8} parent=0 // pred_region
    _
  $region5: #{tile.8} parent=0 // pred_fallthru
    _
  %v4 = vld [vmem:[%s0] ss:$0 sm:$0xff]
  %5 = vst [vmem:[%s1] sm:$0xf] %v4

// kernel: tile.9
$region0: #{tile.9}
  %s0 = inlined_call_operand.vmem [shape: f32[4,10], index: 0, kind: input, shape index: {}]
  %s1 = inlined_call_operand.vmem [shape: f32[1,40], index: 1, kind: output, shape index: {}]
  $region1: #{tile.9} parent=0
    #allocation0 [shape = 'u8[4096]{0}', space=vmem, size = 0x1000, scoped, tag = 'scoped mem for output reshape']
    #allocation1 [shape = 'u8[4096]{0}', space=vmem, size = 0x1000, scoped, tag = 'scoped mem for input reshape']
    %s3 = sshllo.u32 0, 4
    %v4 = vld [vmem:[%s0] sm:%s3]
    %5 = vst [vmem:[#allocation1] sm:%s3] %v4
    %v6 = vld [vmem:[#allocation1] sm:$0x1]
    %vm7 = vcmask 80896
    %8 = vst.msk [vmem:[#allocation0] sm:$0x1] %vm7, %v6
    %s9 = scalar_lea.vmem [#allocation1], 3
    %v10 = vld [vmem:[%s9] sm:$0x1]
    %11 = vrot.lane.b32.xlu0 %v10, 30
    %v12 = vpop.permute.xlu0 %11
    %vm13 = vcmask 326896
    %14 = vst.msk [vmem:[#allocation0] sm:$0x1] %vm13, %v12
    %s15 = scalar_lea.vmem [#allocation1], 2
    %v16 = vld [vmem:[%s15] sm:$0x1]
    %17 = vrot.lane.b32.xlu0 %v16, 20
    %v18 = vpop.permute.xlu0 %17
    %vm19 = vcmask 244896
    %20 = vst.msk [vmem:[#allocation0] sm:$0x1] %vm19, %v18
    %s21 = scalar_lea.vmem [#allocation1], 1
    %v22 = vld [vmem:[%s21] sm:$0x1]
    %23 = vrot.lane.b32.xlu0 %v22, 10
    %v24 = vpop.permute.xlu0 %23
    %vm25 = vcmask 162896
    %26 = vst.msk [vmem:[#allocation0] sm:$0x1] %vm25, %v24
    %s28 = sshllo.u32 0, 1
    %v30 = vld [vmem:[#allocation0] sm:%s28]
    %s31 = sshllo.u32 0, 1
    %32 = vst [vmem:[%s1] sm:%s31] %v30

// kernel: model_forward.3
$region0: #{model_forward.3}
  #allocation0 [shape = 'u32[]', space=smem, size = 0x4, offset = 0x4, fixed_abs, tag = 'smem constant byte address 0x4 - core index']
  #allocation1 [shape = 'u32[144,128]{1,0:T(1,128)}', space=vmem, size = 0x12000, scoped, tag = 'internal scratch']
  %s0 = inlined_call_operand.vmem [shape: bf16[128,288], index: 0, kind: input, shape index: {}]
  %s1 = inlined_call_operand.vmem [shape: bf16[288,40], index: 1, kind: input, shape index: {}]
  %s2 = inlined_call_operand.vmem [shape: f32[1,40], index: 2, kind: input, shape index: {}]
  %s3 = inlined_call_operand.vmem [shape: f32[128,40], index: 3, kind: output, shape index: {}]
  %s4 = sld [smem:[#allocation0]]
  $region45: #{model_forward.3} parent=0
    _
  %s6 = ssub.s32 1, %s4
  %s7 = scalar_select 0, %s6, %s4
  loop: start=0, step=1, limit=4
  $region2: #{model_forward.3} parent=0 // loop_pre_header
    _
  $region3: #{model_forward.3} parent=0 // loop_header
    %s9 = sphi 0, %s13
    %p10 = scmp.ge.s32.totalorder %s9, 4
    %s19 = sphi 0, %s21
    %s22 = sphi 0, %s19
    %s23 = sphi 0, %s22
    %s39 = sphi 0, %s23
    %s43 = sphi 0, %s43
    %s45 = sphi 0, %s43
    %s46 = sphi 0, %s45
    %s60 = sphi 0, %s46
    %s64 = sphi 0, %s64
    %s66 = sphi 0, %s64
    %s67 = sphi 0, %s66
    %s81 = sphi 0, %s67
    %s87 = sphi 0, %s89
    %s90 = sphi 0, %s87
    %s91 = sphi 0, %s90
    %s107 = sphi 0, %s91
  $region4: #{model_forward.3} parent=0 // loop_header_branch
    %12 = sbr.rel (%p10) target = $region8
  $region5: #{model_forward.3} parent=0 // loop_body
    %s14 = ssub.s32 %s9, 1
    %s15 = ssub.s32 %s9, 2
    %s16 = sadd.s32 %s9, 1
    %s17 = ssub.s32 %s9, %s16
    %p18 = scmp.eq.s32.totalorder %s17, 0
    %s20 = sadd.s32 %s19, 1
    %s21 = scalar_select %p18, %s19, %s20
    %p24 = pneg %p18
    %p25 = scmp.eq.s32.totalorder %s9, 1
    %p26 = por %p24, %p25
    %p27 = scmp.ne.s32.totalorder %s19, %s22
    %p28 = scmp.eq.s32.totalorder %s9, 0
    %p29 = por %p27, %p28
    %p30 = scmp.ne.s32.totalorder %s19, %s22
    %p31 = scmp.eq.s32.totalorder %s14, 1
    %p32 = por %p30, %p31
    %p33 = scmp.ne.s32.totalorder %s22, %s23
    %p34 = scmp.eq.s32.totalorder %s14, 0
    %p35 = por %p33, %p34
    %p36 = scmp.ne.s32.totalorder %s22, %s23
    %p37 = scmp.eq.s32.totalorder %s15, 1
    %p38 = por %p36, %p37
    %p40 = scmp.ne.s32.totalorder %s23, %s39
    %p41 = scmp.eq.s32.totalorder %s15, 0
    %p42 = por %p40, %p41
    %s44 = sadd.s32 %s43, 1
    %p47 = scmp.eq.s32.totalorder %s9, 1
    %p48 = scmp.ne.s32.totalorder %s43, %s45
    %p49 = scmp.eq.s32.totalorder %s9, 0
    %p50 = por %p48, %p49
    %p51 = scmp.ne.s32.totalorder %s43, %s45
    %p52 = scmp.eq.s32.totalorder %s14, 1
    %p53 = por %p51, %p52
    %p54 = scmp.ne.s32.totalorder %s45, %s46
    %p55 = scmp.eq.s32.totalorder %s14, 0
    %p56 = por %p54, %p55
    %p57 = scmp.ne.s32.totalorder %s45, %s46
    %p58 = scmp.eq.s32.totalorder %s15, 1
    %p59 = por %p57, %p58
    %p61 = scmp.ne.s32.totalorder %s46, %s60
    %p62 = scmp.eq.s32.totalorder %s15, 0
    %p63 = por %p61, %p62
    %s65 = sadd.s32 %s64, 1
    %p68 = scmp.eq.s32.totalorder %s9, 1
    %p69 = scmp.ne.s32.totalorder %s64, %s66
    %p70 = scmp.eq.s32.totalorder %s9, 0
    %p71 = por %p69, %p70
    %p72 = scmp.ne.s32.totalorder %s64, %s66
    %p73 = scmp.eq.s32.totalorder %s14, 1
    %p74 = por %p72, %p73
    %p75 = scmp.ne.s32.totalorder %s66, %s67
    %p76 = scmp.eq.s32.totalorder %s14, 0
    %p77 = por %p75, %p76
    %p78 = scmp.ne.s32.totalorder %s66, %s67
    %p79 = scmp.eq.s32.totalorder %s15, 1
    %p80 = por %p78, %p79
    %p82 = scmp.ne.s32.totalorder %s67, %s81
    %p83 = scmp.eq.s32.totalorder %s15, 0
    %p84 = por %p82, %p83
    %s85 = ssub.s32 %s9, %s16
    %p86 = scmp.eq.s32.totalorder %s85, 0
    %s88 = sadd.s32 %s87, 1
    %s89 = scalar_select %p86, %s87, %s88
    %p92 = pneg %p86
    %p93 = scmp.eq.s32.totalorder %s9, 1
    %p94 = por %p92, %p93
    %p95 = scmp.ne.s32.totalorder %s87, %s90
    %p96 = scmp.eq.s32.totalorder %s9, 0
    %p97 = por %p95, %p96
    %p98 = scmp.ne.s32.totalorder %s87, %s90
    %p99 = scmp.eq.s32.totalorder %s14, 1
    %p100 = por %p98, %p99
    %p101 = scmp.ne.s32.totalorder %s90, %s91
    %p102 = scmp.eq.s32.totalorder %s14, 0
    %p103 = por %p101, %p102
    %p104 = scmp.ne.s32.totalorder %s90, %s91
    %p105 = scmp.eq.s32.totalorder %s15, 1
    %p106 = por %p104, %p105
    %p108 = scmp.ne.s32.totalorder %s91, %s107
    %p109 = scmp.eq.s32.totalorder %s15, 0
    %p110 = por %p108, %p109
    %p111 = scmp.le.s32.totalorder 1, %s9
    %p112 = scmp.lt.s32.totalorder %s9, 3
    %p113 = pnand %p111, %p112
    %p114 = pneg %p113
    // Predicated region
    $region9: #{model_forward.3} parent=5 // pred_check
      _
    $region10: #{model_forward.3} parent=5 // pred_check_branch
      %116 = sbr.rel (%p113) target = $region12
    $region11: #{model_forward.3} parent=5 // pred_region
      %s117 = ssub.s32 %s9, 1
      // Predicated region
      $region13: #{model_forward.3} parent=11 // pred_check
        %p118 = pneg %p56
      $region14: #{model_forward.3} parent=11 // pred_check_branch
        %120 = sbr.rel (%p118) target = $region16
      $region15: #{model_forward.3} parent=11 // pred_region
        _
      $region16: #{model_forward.3} parent=11 // pred_fallthru
        _
      // Predicated region
      $region17: #{model_forward.3} parent=11 // pred_check
        %p121 = pneg %p77
      $region18: #{model_forward.3} parent=11 // pred_check_branch
        %123 = sbr.rel (%p121) target = $region20
      $region19: #{model_forward.3} parent=11 // pred_region
        _
      $region20: #{model_forward.3} parent=11 // pred_fallthru
        _
    $region12: #{model_forward.3} parent=5 // pred_fallthru
      _
    %p124 = scmp.lt.s32.totalorder %s9, 2
    // Predicated region
    $region21: #{model_forward.3} parent=5 // pred_check
      %p125 = pneg %p124
    $region22: #{model_forward.3} parent=5 // pred_check_branch
      %127 = sbr.rel (%p125) target = $region24
    $region23: #{model_forward.3} parent=5 // pred_region
      // Predicated region
      $region25: #{model_forward.3} parent=23 // pred_check
        %p128 = pneg %p29
      $region26: #{model_forward.3} parent=23 // pred_check_branch
        %130 = sbr.rel (%p128) target = $region28
      $region27: #{model_forward.3} parent=23 // pred_region
        %s131 = smul.u32 8, %s9
        %p132 = scmp.lt.s32.totalorder %s131, 15
        %s133 = scalar_select %p132, %s131, 15
        %s134 = smul.addr %s133, 3
        %s135 = smul.addr %s134, 4
        %s136 = scalar_lea.vmem %s0, %s135
        %s137 = smul.u32 8, %s9
      $region28: #{model_forward.3} parent=23 // pred_fallthru
        _
    $region24: #{model_forward.3} parent=5 // pred_fallthru
      _
    %p138 = scmp.le.s32.totalorder 1, %s9
    %p139 = scmp.lt.s32.totalorder %s9, 3
    %p140 = pnand %p138, %p139
    %p141 = pneg %p140
    // Predicated region
    $region29: #{model_forward.3} parent=5 // pred_check
      _
    $region30: #{model_forward.3} parent=5 // pred_check_branch
      %143 = sbr.rel (%p140) target = $region32
    $region31: #{model_forward.3} parent=5 // pred_region
      %s144 = ssub.s32 %s9, 1
      %s145 = smul.u32 8, %s14
      %p146 = scmp.lt.s32.totalorder %s145, 15
      %s147 = scalar_select %p146, %s145, 15
      %s148 = smul.addr %s147, 3
      %s149 = smul.addr %s148, 4
      %s150 = scalar_lea.vmem %s0, %s149
      %p151 = pneg %p35
      %p152 = pneg %p32
      %p153 = pneg %p56
      %p154 = pneg %p53
      %p155 = pneg %p77
      %p156 = pneg %p74
      %p157 = pneg %p103
      %p158 = pneg %p100
      %s159 = smul.u32 8, %s14
      %p160 = scmp.lt.s32.totalorder %s159, 15
      %s161 = scalar_select %p160, %s159, 15
      %s162 = smul.addr %s161, 8
      %s163 = scalar_lea.vmem %s3, %s162
      %s164 = smul.u32 8, %s14
      %p165 = scmp.lt.s32.totalorder %s164, 15
      %s166 = scalar_select %p165, %s164, 15
      %s167 = smul.addr %s166, 3
      %s168 = smul.addr %s167, 4
      %s169 = scalar_lea.vmem %s0, %s168
      %s170 = smul.u32 8, %s14
      %s171 = smul.u32 8, %s14
      %p172 = scmp.lt.s32.totalorder %s171, 15
      %s173 = scalar_select %p172, %s171, 15
      %s174 = smul.addr %s173, 8
      %s175 = scalar_lea.vmem %s3, %s174
      %s176 = smul.u32 8, %s14
      %v178 = vld [vmem:[%s169] sm:$0xff]
      %v179 = vld [vmem:[%s169 + $0x8] sm:$0xf]
      %v180 = vld [vmem:[%s169 + $0xc] sm:$0xff]
      %v181 = vld [vmem:[%s169 + $0x14] sm:$0xf]
      %v182 = vld [vmem:[%s169 + $0x18] sm:$0xff]
      %v183 = vld [vmem:[%s169 + $0x20] sm:$0xf]
      %v184 = vld [vmem:[%s169 + $0x24] sm:$0xff]
      %v185 = vld [vmem:[%s169 + $0x2c] sm:$0xf]
      %v186 = vld [vmem:[%s169 + $0x30] sm:$0xff]
      %v187 = vld [vmem:[%s169 + $0x38] sm:$0xf]
      %v188 = vld [vmem:[%s169 + $0x3c] sm:$0xff]
      %v189 = vld [vmem:[%s169 + $0x44] sm:$0xf]
      %v190 = vld [vmem:[%s169 + $0x48] sm:$0xff]
      %v191 = vld [vmem:[%s169 + $0x50] sm:$0xf]
      %v192 = vld [vmem:[%s169 + $0x54] sm:$0xff]
      %v193 = vld [vmem:[%s169 + $0x5c] sm:$0xf]
      %v194 = vld [vmem:[%s1] sm:$0xf]
      %v195 = vld [vmem:[%s1 + $0x4] sm:$0xf]
      %v196 = vld [vmem:[%s1 + $0x8] sm:$0xf]
      %v197 = vld [vmem:[%s1 + $0xc] sm:$0xf]
      %v198 = vld [vmem:[%s1 + $0x10] sm:$0xf]
      %v199 = vld [vmem:[%s1 + $0x14] sm:$0xf]
      %v200 = vld [vmem:[%s1 + $0x18] sm:$0xf]
      %v201 = vld [vmem:[%s1 + $0x1c] sm:$0xf]
      %v202 = vld [vmem:[%s1 + $0x20] sm:$0xf]
      %v203 = vld [vmem:[%s1 + $0x24] sm:$0xf]
      %v204 = vld [vmem:[%s1 + $0x28] sm:$0xf]
      %v205 = vld [vmem:[%s1 + $0x2c] sm:$0xf]
      %v206 = vld [vmem:[%s1 + $0x30] sm:$0xf]
      %v207 = vld [vmem:[%s1 + $0x34] sm:$0xf]
      %v208 = vld [vmem:[%s1 + $0x38] sm:$0xf]
      %v209 = vld [vmem:[%s1 + $0x3c] sm:$0xf]
      %v210 = vld [vmem:[%s1 + $0x40] sm:$0xf]
      %v211 = vld [vmem:[%s1 + $0x44] sm:$0xf]
      %v212 = vld [vmem:[%s1 + $0x48] sm:$0xf]
      %v213 = vld [vmem:[%s1 + $0x4c] sm:$0xf]
      %v214 = vld [vmem:[%s1 + $0x50] sm:$0xf]
      %v215 = vld [vmem:[%s1 + $0x54] sm:$0xf]
      %v216 = vld [vmem:[%s1 + $0x58] sm:$0xf]
      %v217 = vld [vmem:[%s1 + $0x5c] sm:$0xf]
      %v218 = vld [vmem:[%s1 + $0x60] sm:$0xf]
      %v219 = vld [vmem:[%s1 + $0x64] sm:$0xf]
      %v220 = vld [vmem:[%s1 + $0x68] sm:$0xf]
      %v221 = vld [vmem:[%s1 + $0x6c] sm:$0xf]
      %v222 = vld [vmem:[%s1 + $0x70] sm:$0xf]
      %v223 = vld [vmem:[%s1 + $0x74] sm:$0xf]
      %v224 = vld [vmem:[%s1 + $0x78] sm:$0xf]
      %v225 = vld [vmem:[%s1 + $0x7c] sm:$0xf]
      %v226 = vld [vmem:[%s1 + $0x80] sm:$0xf]
      %v227 = vld [vmem:[%s1 + $0x84] sm:$0xf]
      %v228 = vld [vmem:[%s1 + $0x88] sm:$0xf]
      %v229 = vld [vmem:[%s1 + $0x8c] sm:$0xf]
      %v230 = vld [vmem:[%s2] sm:$0x1]
      %v232 = vlaneseq
      %v233 = vshrl.u32 %v232, 7
      %v234 = vsub.s32 0, %v233
      %v235 = vrot.slane %v230, %v234
      %v253 = vunpack.c.l.b16 %v178
      %v254 = vunpack.c.h.b16 %v178
      %v255 = vunpack.c.l.b16 %v179
      %v256 = vunpack.c.l.b16 %v180
      %v257 = vunpack.c.h.b16 %v180
      %v258 = vunpack.c.l.b16 %v181
      %v259 = vunpack.c.l.b16 %v182
      %v260 = vunpack.c.h.b16 %v182
      %v261 = vunpack.c.l.b16 %v183
      %v262 = vunpack.c.l.b16 %v184
      %v263 = vunpack.c.h.b16 %v184
      %v264 = vunpack.c.l.b16 %v185
      %v265 = vunpack.c.l.b16 %v186
      %v266 = vunpack.c.h.b16 %v186
      %v267 = vunpack.c.l.b16 %v187
      %v268 = vunpack.c.l.b16 %v188
      %v269 = vunpack.c.h.b16 %v188
      %v270 = vunpack.c.l.b16 %v189
      %v271 = vunpack.c.l.b16 %v190
      %v272 = vunpack.c.h.b16 %v190
      %v273 = vunpack.c.l.b16 %v191
      %v274 = vunpack.c.l.b16 %v192
      %v275 = vunpack.c.h.b16 %v192
      %v276 = vunpack.c.l.b16 %v193
      %v277 = vpack.c.b16 %v256, %v253
      %v278 = vpack.c.b16 %v257, %v254
      %v279 = vpack.c.b16 %v258, %v255
      %v280 = vpack.c.b16 %v262, %v259
      %v281 = vpack.c.b16 %v263, %v260
      %v282 = vpack.c.b16 %v264, %v261
      %v283 = vpack.c.b16 %v268, %v265
      %v284 = vpack.c.b16 %v269, %v266
      %v285 = vpack.c.b16 %v270, %v267
      %v286 = vpack.c.b16 %v274, %v271
      %v287 = vpack.c.b16 %v275, %v272
      %v288 = vpack.c.b16 %v276, %v273
      %v333 = vunpack.c.l.b16 %v194
      %v334 = vunpack.c.l.b16 %v195
      %v335 = vunpack.c.l.b16 %v196
      %v336 = vunpack.c.l.b16 %v197
      %v337 = vunpack.c.l.b16 %v198
      %v338 = vunpack.c.l.b16 %v199
      %v339 = vunpack.c.l.b16 %v200
      %v340 = vunpack.c.l.b16 %v201
      %v341 = vunpack.c.l.b16 %v202
      %v342 = vunpack.c.l.b16 %v203
      %v343 = vunpack.c.l.b16 %v204
      %v344 = vunpack.c.l.b16 %v205
      %v345 = vunpack.c.l.b16 %v206
      %v346 = vunpack.c.l.b16 %v207
      %v347 = vunpack.c.l.b16 %v208
      %v348 = vunpack.c.l.b16 %v209
      %v349 = vunpack.c.l.b16 %v210
      %v350 = vunpack.c.l.b16 %v211
      %v351 = vunpack.c.l.b16 %v212
      %v352 = vunpack.c.l.b16 %v213
      %v353 = vunpack.c.l.b16 %v214
      %v354 = vunpack.c.l.b16 %v215
      %v355 = vunpack.c.l.b16 %v216
      %v356 = vunpack.c.l.b16 %v217
      %v357 = vunpack.c.l.b16 %v218
      %v358 = vunpack.c.l.b16 %v219
      %v359 = vunpack.c.l.b16 %v220
      %v360 = vunpack.c.l.b16 %v221
      %v361 = vunpack.c.l.b16 %v222
      %v362 = vunpack.c.l.b16 %v223
      %v363 = vunpack.c.l.b16 %v224
      %v364 = vunpack.c.l.b16 %v225
      %v365 = vunpack.c.l.b16 %v226
      %v366 = vunpack.c.l.b16 %v227
      %v367 = vunpack.c.l.b16 %v228
      %v368 = vunpack.c.l.b16 %v229
      %v369 = vpack.c.b16 %v334, %v333
      %v370 = vpack.c.b16 %v336, %v335
      %v371 = vpack.c.b16 %v338, %v337
      %v372 = vpack.c.b16 %v340, %v339
      %v373 = vpack.c.b16 %v342, %v341
      %v374 = vpack.c.b16 %v344, %v343
      %v375 = vpack.c.b16 %v346, %v345
      %v376 = vpack.c.b16 %v348, %v347
      %v377 = vpack.c.b16 %v350, %v349
      %v378 = vpack.c.b16 %v352, %v351
      %v379 = vpack.c.b16 %v354, %v353
      %v380 = vpack.c.b16 %v356, %v355
      %v381 = vpack.c.b16 %v358, %v357
      %v382 = vpack.c.b16 %v360, %v359
      %v383 = vpack.c.b16 %v362, %v361
      %v384 = vpack.c.b16 %v364, %v363
      %v385 = vpack.c.b16 %v366, %v365
      %v386 = vpack.c.b16 %v368, %v367
      %vm405 = vcmask 261120
      %v407 = vsel %vm405, %v279, 0
      %v410 = vsel %vm405, %v282, 0
      %v413 = vsel %vm405, %v285, 0
      %v416 = vsel %vm405, %v288, 0
      %418 = vmatprep.subr.bf16.mxu0 0
      %419 = vmatpush1.bf16.msra.mxu0 %v369
      %420 = vmatprep.subr.bf16.mxu0 0
      %421 = vmatpush1.bf16.msra.mxu0 %v370
      %422 = vmatprep.subr.bf16.mxu0 0
      %423 = vmatpush1.bf16.msra.mxu0 %v371
      %424 = vmatprep.subr.bf16.mxu0 0
      %425 = vmatpush1.bf16.msra.mxu0 %v372
      %426 = vmatprep.subr.bf16.mxu0 0
      %427 = vmatpush1.bf16.msra.mxu0 %v373
      %428 = vmatprep.subr.bf16.mxu0 0
      %429 = vmatpush1.bf16.msra.mxu0 %v374
      %430 = vmatprep.subr.bf16.mxu0 0
      %431 = vmatpush1.bf16.msra.mxu0 %v375
      %432 = vmatprep.subr.bf16.mxu0 0
      %433 = vmatpush1.bf16.msra.mxu0 %v376
      %434 = vmatprep.subr.bf16.mxu0 0
      %435 = vmatpush1.bf16.msra.mxu0 %v377
      %436 = vmatprep.subr.bf16.mxu0 0
      %437 = vmatpush1.bf16.msra.mxu0 %v378
      %438 = vmatprep.subr.bf16.mxu0 0
      %439 = vmatpush1.bf16.msra.mxu0 %v379
      %440 = vmatprep.subr.bf16.mxu0 0
      %441 = vmatpush1.bf16.msra.mxu0 %v380
      %442 = vmatprep.subr.bf16.mxu0 0
      %443 = vmatpush1.bf16.msra.mxu0 %v381
      %444 = vmatprep.subr.bf16.mxu0 0
      %445 = vmatpush1.bf16.msra.mxu0 %v382
      %446 = vmatprep.subr.bf16.mxu0 0
      %447 = vmatpush1.bf16.msra.mxu0 %v383
      %448 = vmatprep.subr.bf16.mxu0 0
      %449 = vmatpush1.bf16.msra.mxu0 %v384
      %450 = vmatprep.mubr.bf16.mxu0 %v278
      %451 = vmatmul.mubr.bf16.gmra.mrb[0].mxu0 %v277
      %v452 = vpop.f32.mrb[0].mxu0
      %v453 = vadd.f32 %v235, %v452
      %v454 = vpop.f32.mrb[0].mxu0
      %v455 = vpop.f32.mrb[0].mxu0
      %v456 = vadd.f32 %v235, %v455
      %v457 = vpop.f32.mrb[0].mxu0
      %458 = vmatprep.mubr.bf16.mxu0 %v281
      %459 = vmatmul.mubr.bf16.gmra.mrb[0].mxu0 %v280
      %v460 = vpop.f32.mrb[0].mxu0
      %v461 = vadd.f32 %v235, %v460
      %v462 = vpop.f32.mrb[0].mxu0
      %v463 = vpop.f32.mrb[0].mxu0
      %v464 = vadd.f32 %v235, %v463
      %v465 = vpop.f32.mrb[0].mxu0
      %466 = vmatprep.mubr.bf16.mxu0 %v284
      %467 = vmatmul.mubr.bf16.gmra.mrb[0].mxu0 %v283
      %v468 = vpop.f32.mrb[0].mxu0
      %v469 = vadd.f32 %v235, %v468
      %v470 = vpop.f32.mrb[0].mxu0
      %v471 = vpop.f32.mrb[0].mxu0
      %v472 = vadd.f32 %v235, %v471
      %v473 = vpop.f32.mrb[0].mxu0
      %474 = vmatprep.mubr.bf16.mxu0 %v287
      %475 = vmatmul.mubr.bf16.gmra.mrb[0].mxu0 %v286
      %v476 = vpop.f32.mrb[0].mxu0
      %v477 = vadd.f32 %v235, %v476
      %v478 = vpop.f32.mrb[0].mxu0
      %v479 = vpop.f32.mrb[0].mxu0
      %v480 = vadd.f32 %v235, %v479
      %v481 = vpop.f32.mrb[0].mxu0
      %482 = vdwg.mxu0
      %483 = vmatprep.subr.bf16.mxu0 0
      %484 = vmatpush1.bf16.msra.mxu0 %v385
      %485 = vmatprep.subr.bf16.mxu0 0
      %486 = vmatpush1.bf16.msra.mxu0 %v386
      %487 = vmatprep.subr.bf16.mxu0 0
      %488 = vmatpush1.bf16.msra.mxu0 0
      %489 = vmatprep.subr.bf16.mxu0 0
      %490 = vmatpush1.bf16.msra.mxu0 0
      %491 = vmatprep.subr.bf16.mxu0 0
      %492 = vmatpush1.bf16.msra.mxu0 0
      %493 = vmatprep.subr.bf16.mxu0 0
      %494 = vmatpush1.bf16.msra.mxu0 0
      %495 = vmatprep.subr.bf16.mxu0 0
      %496 = vmatpush1.bf16.msra.mxu0 0
      %497 = vmatprep.subr.bf16.mxu0 0
      %498 = vmatpush1.bf16.msra.mxu0 0
      %499 = vmatprep.subr.bf16.mxu0 0
      %500 = vmatpush1.bf16.msra.mxu0 0
      %501 = vmatprep.subr.bf16.mxu0 0
      %502 = vmatpush1.bf16.msra.mxu0 0
      %503 = vmatprep.subr.bf16.mxu0 0
      %504 = vmatpush1.bf16.msra.mxu0 0
      %505 = vmatprep.subr.bf16.mxu0 0
      %506 = vmatpush1.bf16.msra.mxu0 0
      %507 = vmatprep.subr.bf16.mxu0 0
      %508 = vmatpush1.bf16.msra.mxu0 0
      %509 = vmatprep.subr.bf16.mxu0 0
      %510 = vmatpush1.bf16.msra.mxu0 0
      %511 = vmatprep.subr.bf16.mxu0 0
      %512 = vmatpush1.bf16.msra.mxu0 0
      %513 = vmatprep.subr.bf16.mxu0 0
      %514 = vmatpush1.bf16.msra.mxu0 0
      %515 = vmatprep.mubr.bf16.mxu0 0
      %516 = vmatmul.mubr.bf16.gmra.mrb[0].mxu0 %v407
      %v517 = vpop.f32.mrb[0].mxu0
      %v518 = vadd.f32 %v453, %v517
      %v519 = vpop.f32.mrb[0].mxu0
      %v520 = vpop.f32.mrb[0].mxu0
      %v521 = vadd.f32 %v456, %v520
      %v522 = vpop.f32.mrb[0].mxu0
      %523 = vmatprep.mubr.bf16.mxu0 0
      %524 = vmatmul.mubr.bf16.gmra.mrb[0].mxu0 %v410
      %v525 = vpop.f32.mrb[0].mxu0
      %v526 = vadd.f32 %v461, %v525
      %v527 = vpop.f32.mrb[0].mxu0
      %v528 = vpop.f32.mrb[0].mxu0
      %v529 = vadd.f32 %v464, %v528
      %v530 = vpop.f32.mrb[0].mxu0
      %531 = vmatprep.mubr.bf16.mxu0 0
      %532 = vmatmul.mubr.bf16.gmra.mrb[0].mxu0 %v413
      %v533 = vpop.f32.mrb[0].mxu0
      %v534 = vadd.f32 %v469, %v533
      %v535 = vpop.f32.mrb[0].mxu0
      %v536 = vpop.f32.mrb[0].mxu0
      %v537 = vadd.f32 %v472, %v536
      %v538 = vpop.f32.mrb[0].mxu0
      %539 = vmatprep.mubr.bf16.mxu0 0
      %540 = vmatmul.mubr.bf16.gmra.mrb[0].mxu0 %v416
      %v541 = vpop.f32.mrb[0].mxu0
      %v542 = vadd.f32 %v477, %v541
      %v543 = vpop.f32.mrb[0].mxu0
      %v544 = vpop.f32.mrb[0].mxu0
      %v545 = vadd.f32 %v480, %v544
      %v546 = vpop.f32.mrb[0].mxu0
      %547 = vdwg.mxu0
      %v548 = vadd.f32 %v518, 10.22
      %v549 = vadd.f32 %v521, 10.22
      %v550 = vadd.f32 %v526, 10.22
      %v551 = vadd.f32 %v529, 10.22
      %v552 = vadd.f32 %v534, 10.22
      %v553 = vadd.f32 %v537, 10.22
      %v554 = vadd.f32 %v542, 10.22
      %v555 = vadd.f32 %v545, 10.22
      %v556 = vmax.f32 %v548, 0.0
      %v557 = vmax.f32 %v549, 0.0
      %v558 = vmax.f32 %v550, 0.0
      %v559 = vmax.f32 %v551, 0.0
      %v560 = vmax.f32 %v552, 0.0
      %v561 = vmax.f32 %v553, 0.0
      %v562 = vmax.f32 %v554, 0.0
      %v563 = vmax.f32 %v555, 0.0
      %v564 = vsub.f32 %v556, 0.9
      %v565 = vsub.f32 %v557, 0.9
      %v566 = vsub.f32 %v558, 0.9
      %v567 = vsub.f32 %v559, 0.9
      %v568 = vsub.f32 %v560, 0.9
      %v569 = vsub.f32 %v561, 0.9
      %v570 = vsub.f32 %v562, 0.9
      %v571 = vsub.f32 %v563, 0.9
      %v572 = vtanh.pop %v564
      %v573 = vtanh.pop %v565
      %v574 = vtanh.pop %v566
      %v575 = vtanh.pop %v567
      %v576 = vtanh.pop %v568
      %v577 = vtanh.pop %v569
      %v578 = vtanh.pop %v570
      %v579 = vtanh.pop %v571
      %vm580 = vcmask 326656
      %581 = vst.msk [vmem:[%s175] sm:$0xff] %vm580, %v572
      %582 = vst.msk [vmem:[%s175 + $0x8] sm:$0xff] %vm580, %v573
      %583 = vst.msk [vmem:[%s175 + $0x10] sm:$0xff] %vm580, %v574
      %584 = vst.msk [vmem:[%s175 + $0x18] sm:$0xff] %vm580, %v575
      %585 = vst.msk [vmem:[%s175 + $0x20] sm:$0xff] %vm580, %v576
      %586 = vst.msk [vmem:[%s175 + $0x28] sm:$0xff] %vm580, %v577
      %587 = vst.msk [vmem:[%s175 + $0x30] sm:$0xff] %vm580, %v578
      %588 = vst.msk [vmem:[%s175 + $0x38] sm:$0xff] %vm580, %v579
      %s589 = smul.u32 8, %s14
      %p590 = scmp.lt.s32.totalorder %s589, 15
      %s591 = scalar_select %p590, %s589, 15
      %s592 = smul.addr %s591, 8
      %s593 = scalar_lea.vmem %s3, %s592
      // Predicated region
      $region33: #{model_forward.3} parent=31 // pred_check
        %p594 = pneg %p100
      $region34: #{model_forward.3} parent=31 // pred_check_branch
        %596 = sbr.rel (%p594) target = $region36
      $region35: #{model_forward.3} parent=31 // pred_region
        %s597 = smul.u32 8, %s14
      $region36: #{model_forward.3} parent=31 // pred_fallthru
        _
    $region32: #{model_forward.3} parent=5 // pred_fallthru
      _
    %p598 = scmp.le.s32.totalorder 2, %s9
    // Predicated region
    $region37: #{model_forward.3} parent=5 // pred_check
      %p599 = pneg %p598
    $region38: #{model_forward.3} parent=5 // pred_check_branch
      %601 = sbr.rel (%p599) target = $region40
    $region39: #{model_forward.3} parent=5 // pred_region
      %s602 = ssub.s32 %s9, 2
      // Predicated region
      $region41: #{model_forward.3} parent=39 // pred_check
        %p603 = pneg %p106
      $region42: #{model_forward.3} parent=39 // pred_check_branch
        %605 = sbr.rel (%p603) target = $region44
      $region43: #{model_forward.3} parent=39 // pred_region
        %s606 = smul.u32 8, %s15
        %p607 = scmp.lt.s32.totalorder %s606, 15
        %s608 = scalar_select %p607, %s606, 15
        %s609 = smul.addr %s608, 8
        %s610 = scalar_lea.vmem %s3, %s609
      $region44: #{model_forward.3} parent=39 // pred_fallthru
        _
    $region40: #{model_forward.3} parent=5 // pred_fallthru
      _
  $region6: #{model_forward.3} parent=0 // loop_footer
    %s13 = sadd.s32 1, %s9
  $region7: #{model_forward.3} parent=0 // loop_footer_branch
    %8 = sbr.rel target = $region3
  $region8: #{model_forward.3} parent=0 // loop_exit
    _

</llo_original>
